<compile_context>
chip_gen: v7x
topology: tpu7x:2x2x1
jax: 0.10.0
libtpu: 0.0.40
codegen_flags: <defaults>
</compile_context>

<pallas_src>
import math
from functools import partial

import jax
import jax.numpy as jnp
from jax import lax
from jax.experimental import pallas as pl
from jax.experimental.pallas import tpu as pltpu


def _attention_local_kernel(x_ref, wqkv_ref, wproj_ref, bqkv_ref, bproj_ref,
                            o_ref, *, num_heads, head_dim, scale):
    # One grid point = one batch element; all heads processed here.
    x = x_ref[0]                  # (N, C)    bf16
    wqkv = wqkv_ref[...]          # (C, 3C)   bf16, resident across grid steps
    wproj = wproj_ref[...]        # (H, hd, C) bf16, resident
    bqkv = bqkv_ref[...]          # (1, 3C)   f32
    bproj = bproj_ref[...]        # (1, C)    f32

    C = num_heads * head_dim
    N = x.shape[0]

    # Fused full-width QKV projection: bf16 operands, f32 accumulation (MXU).
    qkv = jnp.dot(x, wqkv, preferred_element_type=jnp.float32) + bqkv   # (N, 3C)

    # torch layout of the 3C axis is [3, H, hd]: Q block, then K, then V.
    # Scale hoisted out of the per-head loop: applied once to the Q block.
    q = qkv[:, 0:C] * scale
    k = qkv[:, C:2 * C]
    v = qkv[:, 2 * C:3 * C]

    # Cast score/PV matmul operands to bf16 once (MXU-native on v5e/v6e/v7x).
    qb = q.astype(jnp.bfloat16)
    kb = k.astype(jnp.bfloat16)
    vb = v.astype(jnp.bfloat16)

    # Output accumulator initialised with the projection bias (no lane concat).
    out = jnp.broadcast_to(bproj, (N, C))                               # f32

    # Static unrolled head loop (H small here).  For large H / head_dim this
    # should become a single head-batched lax.dot_general (per perf review).
    for h in range(num_heads):
        lo = h * head_dim
        hi = lo + head_dim
        qh = qb[:, lo:hi]                                               # (N, hd)
        kh = kb[:, lo:hi]
        vh = vb[:, lo:hi]

        # q @ k^T without materializing a transpose: contract last dims.
        s = lax.dot_general(qh, kh, (((1,), (1,)), ((), ())),
                            preferred_element_type=jnp.float32)         # (N, N)

        # Numerically-stable softmax over keys, f32, exact divide.
        m = jnp.max(s, axis=-1, keepdims=True)
        e = jnp.exp(s - m)
        p = e / jnp.sum(e, axis=-1, keepdims=True)

        # attn_drop: eval mode -> identity.
        ctx = jnp.dot(p.astype(jnp.bfloat16), vh,
                      preferred_element_type=jnp.float32)               # (N, hd)

        # Per-head accumulation of the output projection: wproj[h] is a clean
        # leading-axis slice (hd, C); MXU work identical to a merged matmul.
        out = out + jnp.dot(ctx.astype(jnp.bfloat16), wproj[h],
                            preferred_element_type=jnp.float32)         # (N, C)

    # proj_drop: eval mode -> identity.
    o_ref[0] = out


def attention_local(x, Wqkv, Wproj, bproj, num_heads, qk_scale=None, bqkv=None):
    """Pallas implementation of Attention_local.forward (with_qkv=True, eval)."""
    B, N, C = x.shape
    hd = C // num_heads
    scale = float(qk_scale) if qk_scale is not None else hd ** (-0.5)

    # torch nn.Linear: y = x @ W.T (+ b); pre-transpose/reshape once in XLA.
    # bf16 MXU operands, f32 biases (accumulation / elementwise stay f32).
    xb = x.astype(jnp.bfloat16)
    WqkvT = Wqkv.T.astype(jnp.bfloat16)                       # (C, 3C)
    WprojR = Wproj.T.reshape(num_heads, hd, C).astype(jnp.bfloat16)  # (H, hd, C)
    bproj2 = bproj.reshape(1, C).astype(jnp.float32)
    if bqkv is None:                                          # qkv_bias=False
        bqkv = jnp.zeros((3 * C,), jnp.float32)
    bqkv2 = bqkv.reshape(1, 3 * C).astype(jnp.float32)

    return pl.pallas_call(
        partial(_attention_local_kernel,
                num_heads=num_heads, head_dim=hd, scale=scale),
        grid=(B,),
        in_specs=[
            pl.BlockSpec((1, N, C), lambda b: (b, 0, 0)),             # x, per batch
            pl.BlockSpec((C, 3 * C), lambda b: (0, 0)),               # Wqkv^T, resident
            pl.BlockSpec((num_heads, hd, C), lambda b: (0, 0, 0)),    # Wproj^T (H,hd,C)
            pl.BlockSpec((1, 3 * C), lambda b: (0, 0)),               # qkv bias
            pl.BlockSpec((1, C), lambda b: (0, 0)),                   # proj bias
        ],
        out_specs=pl.BlockSpec((1, N, C), lambda b: (b, 0, 0)),
        out_shape=jax.ShapeDtypeStruct((B, N, C), jnp.float32),
        compiler_params=pltpu.CompilerParams(
            dimension_semantics=("parallel",)),   # megacore / v7x: split batch
    )(xb, WqkvT, WprojR, bqkv2, bproj2)


def _reference(x, Wqkv, Wproj, bproj, num_heads, qk_scale=None, bqkv=None,
               matmul_dtype=jnp.float32):
    """Pure-JAX reference mirroring the torch forward.

    With matmul_dtype=float32 this is the exact torch math.  With
    matmul_dtype=bfloat16 it mirrors the kernel's MXU policy (bf16 matmul
    operands, f32 accumulation, f32 softmax), so the comparison in __main__ is
    tolerance-tight and backend-independent.
    """
    B, N, C = x.shape
    hd = C // num_heads
    scale = float(qk_scale) if qk_scale is not None else hd ** (-0.5)
    md = matmul_dtype
    f32 = jnp.float32

    qkv = jnp.dot(x.astype(md), Wqkv.T.astype(md),
                  preferred_element_type=f32)                           # (B, N, 3C)
    if bqkv is not None:
        qkv = qkv + bqkv.astype(f32)
    qkv = qkv.reshape(B, N, 3, num_heads, hd).transpose(2, 0, 3, 1, 4)
    q, k, v = qkv[0], qkv[1], qkv[2]                                    # (B, H, N, hd)
    q = q * scale
    s = jnp.einsum("bhqd,bhkd->bhqk", q.astype(md), k.astype(md),
                   preferred_element_type=f32)
    m = jnp.max(s, axis=-1, keepdims=True)
    e = jnp.exp(s - m)
    p = e / jnp.sum(e, axis=-1, keepdims=True)
    ctx = jnp.einsum("bhqk,bhkd->bhqd", p.astype(md), v.astype(md),
                     preferred_element_type=f32)
    ctx = ctx.transpose(0, 2, 1, 3).reshape(B, N, C)
    out = jnp.dot(ctx.astype(md), Wproj.T.astype(md),
                  preferred_element_type=f32) + bproj.astype(f32)
    return out


if __name__ == "__main__":
    # Small config implied by the module: dim=32, num_heads=4, seq=8, batch=2.
    B, N, C, H = 2, 8, 32, 4

    key = jax.random.PRNGKey(0)
    kx, kw1, kw2, kb = jax.random.split(key, 4)

    x = jax.random.normal(kx, (B, N, C), jnp.float32)

    # Kaiming-uniform-like init (fan_in): bound = sqrt(6 / fan_in).
    bound = math.sqrt(6.0 / C)
    Wqkv = jax.random.uniform(kw1, (3 * C, C), jnp.float32, -bound, bound)
    Wproj = jax.random.uniform(kw2, (C, C), jnp.float32, -bound, bound)
    bproj = jax.random.uniform(kb, (C,), jnp.float32,
                               -1.0 / math.sqrt(C), 1.0 / math.sqrt(C))

    out = attention_local(x, Wqkv, Wproj, bproj, H)
    out = jax.block_until_ready(out)

    # Reference mirrors the kernel's bf16-MXU-operand / f32-accumulation policy
    # so typical |diff| is ~1e-5; tolerance leaves headroom for accumulation
    # order and rare bf16 rounding-boundary flips across backends.
    ref = _reference(x, Wqkv, Wproj, bproj, H, matmul_dtype=jnp.bfloat16)

    assert out.shape == (B, N, C)
    assert jnp.allclose(out, ref, atol=5e-3, rtol=5e-3), "mismatch vs reference"

    print("KERNEL_OK")
</pallas_src>

<mosaic_0001>
module attributes {stable_mosaic.version = 11 : i64} {
  func.func @_attention_local_kernel(%arg0: i32, %arg1: memref<1x8x32xbf16, #tpu.memory_space<vmem>>, %arg2: memref<32x96xbf16, #tpu.memory_space<vmem>>, %arg3: memref<4x8x32xbf16, #tpu.memory_space<vmem>>, %arg4: memref<1x96xf32, #tpu.memory_space<vmem>>, %arg5: memref<1x32xf32, #tpu.memory_space<vmem>>, %arg6: memref<1x8x32xf32, #tpu.memory_space<vmem>>) attributes {dimension_semantics = [#tpu.dimension_semantics<parallel>], iteration_bounds = array<i64: 2>, scalar_prefetch = 0 : i64, scratch_operands = 0 : i64, tpu.core_type = #tpu.core_type<tc>, window_params = [{transform_indices = @transform_0, window_bounds = array<i64: 1, 8, 32>}, {pipeline_mode = #tpu.pipeline_mode<synchronous>, transform_indices = @transform_1, window_bounds = array<i64: 32, 96>}, {pipeline_mode = #tpu.pipeline_mode<synchronous>, transform_indices = @transform_2, window_bounds = array<i64: 4, 8, 32>}, {pipeline_mode = #tpu.pipeline_mode<synchronous>, transform_indices = @transform_3, window_bounds = array<i64: 1, 96>}, {pipeline_mode = #tpu.pipeline_mode<synchronous>, transform_indices = @transform_4, window_bounds = array<i64: 1, 32>}, {transform_indices = @transform_5, window_bounds = array<i64: 1, 8, 32>}]} {
    %c0 = arith.constant 0 : index
    %c0_0 = arith.constant 0 : index
    %c0_1 = arith.constant 0 : index
    %0 = vector.load %arg1[%c0, %c0_0, %c0_1] : memref<1x8x32xbf16, #tpu.memory_space<vmem>>, vector<1x8x32xbf16>
    %1 = vector.shape_cast %0 : vector<1x8x32xbf16> to vector<8x32xbf16>
    %c0_2 = arith.constant 0 : index
    %c0_3 = arith.constant 0 : index
    %2 = vector.load %arg2[%c0_2, %c0_3] : memref<32x96xbf16, #tpu.memory_space<vmem>>, vector<32x96xbf16>
    %c0_4 = arith.constant 0 : index
    %c0_5 = arith.constant 0 : index
    %c0_6 = arith.constant 0 : index
    %3 = vector.load %arg3[%c0_4, %c0_5, %c0_6] : memref<4x8x32xbf16, #tpu.memory_space<vmem>>, vector<4x8x32xbf16>
    %c0_7 = arith.constant 0 : index
    %c0_8 = arith.constant 0 : index
    %4 = vector.load %arg4[%c0_7, %c0_8] : memref<1x96xf32, #tpu.memory_space<vmem>>, vector<1x96xf32>
    %c0_9 = arith.constant 0 : index
    %c0_10 = arith.constant 0 : index
    %5 = vector.load %arg5[%c0_9, %c0_10] : memref<1x32xf32, #tpu.memory_space<vmem>>, vector<1x32xf32>
    %cst = arith.constant dense<0.000000e+00> : vector<8x96xf32>
    %6 = tpu.matmul %1, %2, %cst {dimension_numbers = #tpu.dot_dimension_numbers<[1], [0], [0], [1], [0, 0, 1, 1], [], []>} : vector<8x32xbf16>, vector<32x96xbf16>, vector<8x96xf32> -> vector<8x96xf32>
    %7 = vector.broadcast %4 : vector<1x96xf32> to vector<8x96xf32>
    %8 = arith.addf %6, %7 : vector<8x96xf32>
    %9 = vector.extract_strided_slice %8 {offsets = [0, 0], sizes = [8, 32], strides = [1, 1]} : vector<8x96xf32> to vector<8x32xf32>
    %cst_11 = arith.constant 0.353553385 : f32
    %10 = vector.broadcast %cst_11 : f32 to vector<8x32xf32>
    %11 = arith.mulf %9, %10 : vector<8x32xf32>
    %12 = vector.extract_strided_slice %8 {offsets = [0, 32], sizes = [8, 32], strides = [1, 1]} : vector<8x96xf32> to vector<8x32xf32>
    %13 = vector.extract_strided_slice %8 {offsets = [0, 64], sizes = [8, 32], strides = [1, 1]} : vector<8x96xf32> to vector<8x32xf32>
    %14 = arith.truncf %11 : vector<8x32xf32> to vector<8x32xbf16>
    %15 = arith.truncf %12 : vector<8x32xf32> to vector<8x32xbf16>
    %16 = arith.truncf %13 : vector<8x32xf32> to vector<8x32xbf16>
    %17 = vector.shape_cast %5 : vector<1x32xf32> to vector<1x32xf32>
    %18 = vector.broadcast %17 : vector<1x32xf32> to vector<8x32xf32>
    %19 = vector.extract_strided_slice %14 {offsets = [0, 0], sizes = [8, 8], strides = [1, 1]} : vector<8x32xbf16> to vector<8x8xbf16>
    %20 = vector.extract_strided_slice %15 {offsets = [0, 0], sizes = [8, 8], strides = [1, 1]} : vector<8x32xbf16> to vector<8x8xbf16>
    %21 = vector.extract_strided_slice %16 {offsets = [0, 0], sizes = [8, 8], strides = [1, 1]} : vector<8x32xbf16> to vector<8x8xbf16>
    %cst_12 = arith.constant dense<0.000000e+00> : vector<8x8xf32>
    %22 = tpu.matmul %19, %20, %cst_12 {dimension_numbers = #tpu.dot_dimension_numbers<[1], [1], [0], [0], [0, 0, 1, 0], [], []>} : vector<8x8xbf16>, vector<8x8xbf16>, vector<8x8xf32> -> vector<8x8xf32>
    %cst_13 = arith.constant dense<0xFF800000> : vector<8xf32>
    %23 = vector.multi_reduction <maximumf>, %22, %cst_13 [1] : vector<8x8xf32> to vector<8xf32>
    %24 = vector.shape_cast %23 : vector<8xf32> to vector<8x1xf32>
    %25 = vector.broadcast %24 : vector<8x1xf32> to vector<8x8xf32>
    %26 = arith.subf %22, %25 : vector<8x8xf32>
    %27 = math.exp %26 : vector<8x8xf32>
    %cst_14 = arith.constant dense<0.000000e+00> : vector<8xf32>
    %28 = vector.multi_reduction <add>, %27, %cst_14 [1] : vector<8x8xf32> to vector<8xf32>
    %29 = vector.shape_cast %28 : vector<8xf32> to vector<8x1xf32>
    %30 = vector.broadcast %29 : vector<8x1xf32> to vector<8x8xf32>
    %31 = arith.divf %27, %30 : vector<8x8xf32>
    %32 = arith.truncf %31 : vector<8x8xf32> to vector<8x8xbf16>
    %cst_15 = arith.constant dense<0.000000e+00> : vector<8x8xf32>
    %33 = tpu.matmul %32, %21, %cst_15 {dimension_numbers = #tpu.dot_dimension_numbers<[1], [0], [0], [1], [0, 0, 1, 1], [], []>} : vector<8x8xbf16>, vector<8x8xbf16>, vector<8x8xf32> -> vector<8x8xf32>
    %34 = arith.truncf %33 : vector<8x8xf32> to vector<8x8xbf16>
    %35 = vector.extract_strided_slice %3 {offsets = [0, 0, 0], sizes = [1, 8, 32], strides = [1, 1, 1]} : vector<4x8x32xbf16> to vector<1x8x32xbf16>
    %36 = vector.shape_cast %35 : vector<1x8x32xbf16> to vector<8x32xbf16>
    %cst_16 = arith.constant dense<0.000000e+00> : vector<8x32xf32>
    %37 = tpu.matmul %34, %36, %cst_16 {dimension_numbers = #tpu.dot_dimension_numbers<[1], [0], [0], [1], [0, 0, 1, 1], [], []>} : vector<8x8xbf16>, vector<8x32xbf16>, vector<8x32xf32> -> vector<8x32xf32>
    %38 = arith.addf %18, %37 : vector<8x32xf32>
    %39 = vector.extract_strided_slice %14 {offsets = [0, 8], sizes = [8, 8], strides = [1, 1]} : vector<8x32xbf16> to vector<8x8xbf16>
    %40 = vector.extract_strided_slice %15 {offsets = [0, 8], sizes = [8, 8], strides = [1, 1]} : vector<8x32xbf16> to vector<8x8xbf16>
    %41 = vector.extract_strided_slice %16 {offsets = [0, 8], sizes = [8, 8], strides = [1, 1]} : vector<8x32xbf16> to vector<8x8xbf16>
    %cst_17 = arith.constant dense<0.000000e+00> : vector<8x8xf32>
    %42 = tpu.matmul %39, %40, %cst_17 {dimension_numbers = #tpu.dot_dimension_numbers<[1], [1], [0], [0], [0, 0, 1, 0], [], []>} : vector<8x8xbf16>, vector<8x8xbf16>, vector<8x8xf32> -> vector<8x8xf32>
    %cst_18 = arith.constant dense<0xFF800000> : vector<8xf32>
    %43 = vector.multi_reduction <maximumf>, %42, %cst_18 [1] : vector<8x8xf32> to vector<8xf32>
    %44 = vector.shape_cast %43 : vector<8xf32> to vector<8x1xf32>
    %45 = vector.broadcast %44 : vector<8x1xf32> to vector<8x8xf32>
    %46 = arith.subf %42, %45 : vector<8x8xf32>
    %47 = math.exp %46 : vector<8x8xf32>
    %cst_19 = arith.constant dense<0.000000e+00> : vector<8xf32>
    %48 = vector.multi_reduction <add>, %47, %cst_19 [1] : vector<8x8xf32> to vector<8xf32>
    %49 = vector.shape_cast %48 : vector<8xf32> to vector<8x1xf32>
    %50 = vector.broadcast %49 : vector<8x1xf32> to vector<8x8xf32>
    %51 = arith.divf %47, %50 : vector<8x8xf32>
    %52 = arith.truncf %51 : vector<8x8xf32> to vector<8x8xbf16>
    %cst_20 = arith.constant dense<0.000000e+00> : vector<8x8xf32>
    %53 = tpu.matmul %52, %41, %cst_20 {dimension_numbers = #tpu.dot_dimension_numbers<[1], [0], [0], [1], [0, 0, 1, 1], [], []>} : vector<8x8xbf16>, vector<8x8xbf16>, vector<8x8xf32> -> vector<8x8xf32>
    %54 = arith.truncf %53 : vector<8x8xf32> to vector<8x8xbf16>
    %55 = vector.extract_strided_slice %3 {offsets = [1, 0, 0], sizes = [1, 8, 32], strides = [1, 1, 1]} : vector<4x8x32xbf16> to vector<1x8x32xbf16>
    %56 = vector.shape_cast %55 : vector<1x8x32xbf16> to vector<8x32xbf16>
    %cst_21 = arith.constant dense<0.000000e+00> : vector<8x32xf32>
    %57 = tpu.matmul %54, %56, %cst_21 {dimension_numbers = #tpu.dot_dimension_numbers<[1], [0], [0], [1], [0, 0, 1, 1], [], []>} : vector<8x8xbf16>, vector<8x32xbf16>, vector<8x32xf32> -> vector<8x32xf32>
    %58 = arith.addf %38, %57 : vector<8x32xf32>
    %59 = vector.extract_strided_slice %14 {offsets = [0, 16], sizes = [8, 8], strides = [1, 1]} : vector<8x32xbf16> to vector<8x8xbf16>
    %60 = vector.extract_strided_slice %15 {offsets = [0, 16], sizes = [8, 8], strides = [1, 1]} : vector<8x32xbf16> to vector<8x8xbf16>
    %61 = vector.extract_strided_slice %16 {offsets = [0, 16], sizes = [8, 8], strides = [1, 1]} : vector<8x32xbf16> to vector<8x8xbf16>
    %cst_22 = arith.constant dense<0.000000e+00> : vector<8x8xf32>
    %62 = tpu.matmul %59, %60, %cst_22 {dimension_numbers = #tpu.dot_dimension_numbers<[1], [1], [0], [0], [0, 0, 1, 0], [], []>} : vector<8x8xbf16>, vector<8x8xbf16>, vector<8x8xf32> -> vector<8x8xf32>
    %cst_23 = arith.constant dense<0xFF800000> : vector<8xf32>
    %63 = vector.multi_reduction <maximumf>, %62, %cst_23 [1] : vector<8x8xf32> to vector<8xf32>
    %64 = vector.shape_cast %63 : vector<8xf32> to vector<8x1xf32>
    %65 = vector.broadcast %64 : vector<8x1xf32> to vector<8x8xf32>
    %66 = arith.subf %62, %65 : vector<8x8xf32>
    %67 = math.exp %66 : vector<8x8xf32>
    %cst_24 = arith.constant dense<0.000000e+00> : vector<8xf32>
    %68 = vector.multi_reduction <add>, %67, %cst_24 [1] : vector<8x8xf32> to vector<8xf32>
    %69 = vector.shape_cast %68 : vector<8xf32> to vector<8x1xf32>
    %70 = vector.broadcast %69 : vector<8x1xf32> to vector<8x8xf32>
    %71 = arith.divf %67, %70 : vector<8x8xf32>
    %72 = arith.truncf %71 : vector<8x8xf32> to vector<8x8xbf16>
    %cst_25 = arith.constant dense<0.000000e+00> : vector<8x8xf32>
    %73 = tpu.matmul %72, %61, %cst_25 {dimension_numbers = #tpu.dot_dimension_numbers<[1], [0], [0], [1], [0, 0, 1, 1], [], []>} : vector<8x8xbf16>, vector<8x8xbf16>, vector<8x8xf32> -> vector<8x8xf32>
    %74 = arith.truncf %73 : vector<8x8xf32> to vector<8x8xbf16>
    %75 = vector.extract_strided_slice %3 {offsets = [2, 0, 0], sizes = [1, 8, 32], strides = [1, 1, 1]} : vector<4x8x32xbf16> to vector<1x8x32xbf16>
    %76 = vector.shape_cast %75 : vector<1x8x32xbf16> to vector<8x32xbf16>
    %cst_26 = arith.constant dense<0.000000e+00> : vector<8x32xf32>
    %77 = tpu.matmul %74, %76, %cst_26 {dimension_numbers = #tpu.dot_dimension_numbers<[1], [0], [0], [1], [0, 0, 1, 1], [], []>} : vector<8x8xbf16>, vector<8x32xbf16>, vector<8x32xf32> -> vector<8x32xf32>
    %78 = arith.addf %58, %77 : vector<8x32xf32>
    %79 = vector.extract_strided_slice %14 {offsets = [0, 24], sizes = [8, 8], strides = [1, 1]} : vector<8x32xbf16> to vector<8x8xbf16>
    %80 = vector.extract_strided_slice %15 {offsets = [0, 24], sizes = [8, 8], strides = [1, 1]} : vector<8x32xbf16> to vector<8x8xbf16>
    %81 = vector.extract_strided_slice %16 {offsets = [0, 24], sizes = [8, 8], strides = [1, 1]} : vector<8x32xbf16> to vector<8x8xbf16>
    %cst_27 = arith.constant dense<0.000000e+00> : vector<8x8xf32>
    %82 = tpu.matmul %79, %80, %cst_27 {dimension_numbers = #tpu.dot_dimension_numbers<[1], [1], [0], [0], [0, 0, 1, 0], [], []>} : vector<8x8xbf16>, vector<8x8xbf16>, vector<8x8xf32> -> vector<8x8xf32>
    %cst_28 = arith.constant dense<0xFF800000> : vector<8xf32>
    %83 = vector.multi_reduction <maximumf>, %82, %cst_28 [1] : vector<8x8xf32> to vector<8xf32>
    %84 = vector.shape_cast %83 : vector<8xf32> to vector<8x1xf32>
    %85 = vector.broadcast %84 : vector<8x1xf32> to vector<8x8xf32>
    %86 = arith.subf %82, %85 : vector<8x8xf32>
    %87 = math.exp %86 : vector<8x8xf32>
    %cst_29 = arith.constant dense<0.000000e+00> : vector<8xf32>
    %88 = vector.multi_reduction <add>, %87, %cst_29 [1] : vector<8x8xf32> to vector<8xf32>
    %89 = vector.shape_cast %88 : vector<8xf32> to vector<8x1xf32>
    %90 = vector.broadcast %89 : vector<8x1xf32> to vector<8x8xf32>
    %91 = arith.divf %87, %90 : vector<8x8xf32>
    %92 = arith.truncf %91 : vector<8x8xf32> to vector<8x8xbf16>
    %cst_30 = arith.constant dense<0.000000e+00> : vector<8x8xf32>
    %93 = tpu.matmul %92, %81, %cst_30 {dimension_numbers = #tpu.dot_dimension_numbers<[1], [0], [0], [1], [0, 0, 1, 1], [], []>} : vector<8x8xbf16>, vector<8x8xbf16>, vector<8x8xf32> -> vector<8x8xf32>
    %94 = arith.truncf %93 : vector<8x8xf32> to vector<8x8xbf16>
    %95 = vector.extract_strided_slice %3 {offsets = [3, 0, 0], sizes = [1, 8, 32], strides = [1, 1, 1]} : vector<4x8x32xbf16> to vector<1x8x32xbf16>
    %96 = vector.shape_cast %95 : vector<1x8x32xbf16> to vector<8x32xbf16>
    %cst_31 = arith.constant dense<0.000000e+00> : vector<8x32xf32>
    %97 = tpu.matmul %94, %96, %cst_31 {dimension_numbers = #tpu.dot_dimension_numbers<[1], [0], [0], [1], [0, 0, 1, 1], [], []>} : vector<8x8xbf16>, vector<8x32xbf16>, vector<8x32xf32> -> vector<8x32xf32>
    %98 = arith.addf %78, %97 : vector<8x32xf32>
    %c0_32 = arith.constant 0 : index
    %c0_33 = arith.constant 0 : index
    %c0_34 = arith.constant 0 : index
    %99 = vector.load %arg6[%c0_32, %c0_33, %c0_34] : memref<1x8x32xf32, #tpu.memory_space<vmem>>, vector<1x8x32xf32>
    %100 = vector.shape_cast %99 : vector<1x8x32xf32> to vector<8x32xf32>
    %101 = vector.shape_cast %98 : vector<8x32xf32> to vector<1x8x32xf32>
    tpu.vector_store %arg6[%c0_32, %c0_33, %c0_34], %101 {strides = array<i32>} : memref<1x8x32xf32, #tpu.memory_space<vmem>>, vector<1x8x32xf32>,
    return
  }
  func.func @transform_0(%arg0: i32) -> (i32, i32, i32) {
    %c0_i32 = arith.constant 0 : i32
    %c0_i32_0 = arith.constant 0 : i32
    %c0_i32_1 = arith.constant 0 : i32
    return %arg0, %c0_i32, %c0_i32_0 : i32, i32, i32
  }
  func.func @transform_1(%arg0: i32) -> (i32, i32) {
    %c0_i32 = arith.constant 0 : i32
    %c0_i32_0 = arith.constant 0 : i32
    %c0_i32_1 = arith.constant 0 : i32
    return %c0_i32, %c0_i32_0 : i32, i32
  }
  func.func @transform_2(%arg0: i32) -> (i32, i32, i32) {
    %c0_i32 = arith.constant 0 : i32
    %c0_i32_0 = arith.constant 0 : i32
    %c0_i32_1 = arith.constant 0 : i32
    %c0_i32_2 = arith.constant 0 : i32
    return %c0_i32, %c0_i32_0, %c0_i32_1 : i32, i32, i32
  }
  func.func @transform_3(%arg0: i32) -> (i32, i32) {
    %c0_i32 = arith.constant 0 : i32
    %c0_i32_0 = arith.constant 0 : i32
    %c0_i32_1 = arith.constant 0 : i32
    return %c0_i32, %c0_i32_0 : i32, i32
  }
  func.func @transform_4(%arg0: i32) -> (i32, i32) {
    %c0_i32 = arith.constant 0 : i32
    %c0_i32_0 = arith.constant 0 : i32
    %c0_i32_1 = arith.constant 0 : i32
    return %c0_i32, %c0_i32_0 : i32, i32
  }
  func.func @transform_5(%arg0: i32) -> (i32, i32, i32) {
    %c0_i32 = arith.constant 0 : i32
    %c0_i32_0 = arith.constant 0 : i32
    %c0_i32_1 = arith.constant 0 : i32
    return %arg0, %c0_i32, %c0_i32_0 : i32, i32, i32
  }
}

</mosaic_0001>

<llo_original>
// kernel: tpu_custom_call.1
$region0: #{tpu_custom_call.1}
  #allocation0 [shape = 'u32[]', space=smem, size = 0x4, offset = 0x4, fixed_abs, tag = 'smem constant byte address 0x4 - core index']
  #allocation1 [shape = 'u32[144,128]{1,0:T(1,128)}', space=vmem, size = 0x12000, scoped, tag = 'internal scratch']
  %s0 = inlined_call_operand.hbm [shape: bf16[2,8,32], index: 0, kind: input, shape index: {}]
  %s1 = inlined_call_operand.hbm [shape: bf16[32,96], index: 1, kind: input, shape index: {}]
  %s2 = inlined_call_operand.hbm [shape: bf16[4,8,32], index: 2, kind: input, shape index: {}]
  %s3 = inlined_call_operand.vmem [shape: f32[1,96], index: 3, kind: input, shape index: {}]
  %s4 = inlined_call_operand.vmem [shape: f32[1,32], index: 4, kind: input, shape index: {}]
  %s5 = inlined_call_operand.hbm [shape: f32[2,8,32], index: 5, kind: output, shape index: {}]
  %s6 = sld [smem:[#allocation0]]
  $region65: #{tpu_custom_call.1} parent=0
    _
  %s8 = ssub.s32 1, %s6
  %s9 = scalar_select 0, %s8, %s6
  $region1: #{tpu_custom_call.1} parent=0
    #allocation2 [shape = 'u8[4096]{0}', space=vmem, size = 0x1000, scoped, tag = 'input window, operand 0']
    #allocation3 [shape = 's32[2]{0}', space=sflag, size = 0x8, scoped, tag = 'scoped memory for tpu_custom_call.1']
    #allocation4 [shape = 's32[2]{0}', space=sflag, size = 0x8, scoped, tag = 'scoped memory for tpu_custom_call.1']
    #allocation5 [shape = 'u8[8192]{0}', space=vmem, size = 0x2000, scoped, tag = 'input window, operand 1, single buffered']
    #allocation6 [shape = 's32[1]{0}', space=sflag, size = 0x4, scoped, tag = 'scoped memory for tpu_custom_call.1']
    #allocation7 [shape = 'u8[8192]{0}', space=vmem, size = 0x2000, scoped, tag = 'input window, operand 2, single buffered']
    #allocation8 [shape = 'u8[8192]{0}', space=vmem, size = 0x2000, scoped, tag = 'output window, operand 0']
    %10 = vsyncpa [#allocation3], 0
    %s11 = scalar_lea.sflag [#allocation3], 1
    %12 = vsyncpa %s11, 0
    %13 = vsyncpa [#allocation6], 0
    %14 = vsyncpa [#allocation4], 0
    %s15 = scalar_lea.sflag [#allocation4], 1
    %16 = vsyncpa %s15, 0
    loop: start=0, step=1, limit=4
    $region2: #{tpu_custom_call.1} parent=1 // loop_pre_header
      _
    $region3: #{tpu_custom_call.1} parent=1 // loop_header
      %s18 = sphi 0, %s22
      %p19 = scmp.ge.s32.totalorder %s18, 4
      %s28 = sphi 0, %s30
      %s31 = sphi 0, %s28
      %s32 = sphi 0, %s31
      %s48 = sphi 0, %s32
      %s52 = sphi 0, %s52
      %s54 = sphi 0, %s52
      %s55 = sphi 0, %s54
      %s69 = sphi 0, %s55
      %s73 = sphi 0, %s73
      %s75 = sphi 0, %s73
      %s76 = sphi 0, %s75
      %s90 = sphi 0, %s76
      %s94 = sphi 0, %s94
      %s96 = sphi 0, %s94
      %s97 = sphi 0, %s96
      %s111 = sphi 0, %s97
      %s115 = sphi 0, %s115
      %s117 = sphi 0, %s115
      %s118 = sphi 0, %s117
      %s132 = sphi 0, %s118
      %s138 = sphi 0, %s140
      %s141 = sphi 0, %s138
      %s142 = sphi 0, %s141
      %s158 = sphi 0, %s142
    $region4: #{tpu_custom_call.1} parent=1 // loop_header_branch
      %21 = sbr.rel (%p19) target = $region8
    $region5: #{tpu_custom_call.1} parent=1 // loop_body
      %s23 = ssub.s32 %s18, 1
      %s24 = ssub.s32 %s18, 2
      %s25 = sadd.s32 %s18, 1
      %s26 = ssub.s32 %s18, %s25
      %p27 = scmp.eq.s32.totalorder %s26, 0
      %s29 = sadd.s32 %s28, 1
      %s30 = scalar_select %p27, %s28, %s29
      %p33 = pneg %p27
      %p34 = scmp.eq.s32.totalorder %s18, 1
      %p35 = por %p33, %p34
      %p36 = scmp.ne.s32.totalorder %s28, %s31
      %p37 = scmp.eq.s32.totalorder %s18, 0
      %p38 = por %p36, %p37
      %p39 = scmp.ne.s32.totalorder %s28, %s31
      %p40 = scmp.eq.s32.totalorder %s23, 1
      %p41 = por %p39, %p40
      %p42 = scmp.ne.s32.totalorder %s31, %s32
      %p43 = scmp.eq.s32.totalorder %s23, 0
      %p44 = por %p42, %p43
      %p45 = scmp.ne.s32.totalorder %s31, %s32
      %p46 = scmp.eq.s32.totalorder %s24, 1
      %p47 = por %p45, %p46
      %p49 = scmp.ne.s32.totalorder %s32, %s48
      %p50 = scmp.eq.s32.totalorder %s24, 0
      %p51 = por %p49, %p50
      %s53 = sadd.s32 %s52, 1
      %p56 = scmp.eq.s32.totalorder %s18, 1
      %p57 = scmp.ne.s32.totalorder %s52, %s54
      %p58 = scmp.eq.s32.totalorder %s18, 0
      %p59 = por %p57, %p58
      %p60 = scmp.ne.s32.totalorder %s52, %s54
      %p61 = scmp.eq.s32.totalorder %s23, 1
      %p62 = por %p60, %p61
      %p63 = scmp.ne.s32.totalorder %s54, %s55
      %p64 = scmp.eq.s32.totalorder %s23, 0
      %p65 = por %p63, %p64
      %p66 = scmp.ne.s32.totalorder %s54, %s55
      %p67 = scmp.eq.s32.totalorder %s24, 1
      %p68 = por %p66, %p67
      %p70 = scmp.ne.s32.totalorder %s55, %s69
      %p71 = scmp.eq.s32.totalorder %s24, 0
      %p72 = por %p70, %p71
      %s74 = sadd.s32 %s73, 1
      %p77 = scmp.eq.s32.totalorder %s18, 1
      %p78 = scmp.ne.s32.totalorder %s73, %s75
      %p79 = scmp.eq.s32.totalorder %s18, 0
      %p80 = por %p78, %p79
      %p81 = scmp.ne.s32.totalorder %s73, %s75
      %p82 = scmp.eq.s32.totalorder %s23, 1
      %p83 = por %p81, %p82
      %p84 = scmp.ne.s32.totalorder %s75, %s76
      %p85 = scmp.eq.s32.totalorder %s23, 0
      %p86 = por %p84, %p85
      %p87 = scmp.ne.s32.totalorder %s75, %s76
      %p88 = scmp.eq.s32.totalorder %s24, 1
      %p89 = por %p87, %p88
      %p91 = scmp.ne.s32.totalorder %s76, %s90
      %p92 = scmp.eq.s32.totalorder %s24, 0
      %p93 = por %p91, %p92
      %s95 = sadd.s32 %s94, 1
      %p98 = scmp.eq.s32.totalorder %s18, 1
      %p99 = scmp.ne.s32.totalorder %s94, %s96
      %p100 = scmp.eq.s32.totalorder %s18, 0
      %p101 = por %p99, %p100
      %p102 = scmp.ne.s32.totalorder %s94, %s96
      %p103 = scmp.eq.s32.totalorder %s23, 1
      %p104 = por %p102, %p103
      %p105 = scmp.ne.s32.totalorder %s96, %s97
      %p106 = scmp.eq.s32.totalorder %s23, 0
      %p107 = por %p105, %p106
      %p108 = scmp.ne.s32.totalorder %s96, %s97
      %p109 = scmp.eq.s32.totalorder %s24, 1
      %p110 = por %p108, %p109
      %p112 = scmp.ne.s32.totalorder %s97, %s111
      %p113 = scmp.eq.s32.totalorder %s24, 0
      %p114 = por %p112, %p113
      %s116 = sadd.s32 %s115, 1
      %p119 = scmp.eq.s32.totalorder %s18, 1
      %p120 = scmp.ne.s32.totalorder %s115, %s117
      %p121 = scmp.eq.s32.totalorder %s18, 0
      %p122 = por %p120, %p121
      %p123 = scmp.ne.s32.totalorder %s115, %s117
      %p124 = scmp.eq.s32.totalorder %s23, 1
      %p125 = por %p123, %p124
      %p126 = scmp.ne.s32.totalorder %s117, %s118
      %p127 = scmp.eq.s32.totalorder %s23, 0
      %p128 = por %p126, %p127
      %p129 = scmp.ne.s32.totalorder %s117, %s118
      %p130 = scmp.eq.s32.totalorder %s24, 1
      %p131 = por %p129, %p130
      %p133 = scmp.ne.s32.totalorder %s118, %s132
      %p134 = scmp.eq.s32.totalorder %s24, 0
      %p135 = por %p133, %p134
      %s136 = ssub.s32 %s18, %s25
      %p137 = scmp.eq.s32.totalorder %s136, 0
      %s139 = sadd.s32 %s138, 1
      %s140 = scalar_select %p137, %s138, %s139
      %p143 = pneg %p137
      %p144 = scmp.eq.s32.totalorder %s18, 1
      %p145 = por %p143, %p144
      %p146 = scmp.ne.s32.totalorder %s138, %s141
      %p147 = scmp.eq.s32.totalorder %s18, 0
      %p148 = por %p146, %p147
      %p149 = scmp.ne.s32.totalorder %s138, %s141
      %p150 = scmp.eq.s32.totalorder %s23, 1
      %p151 = por %p149, %p150
      %p152 = scmp.ne.s32.totalorder %s141, %s142
      %p153 = scmp.eq.s32.totalorder %s23, 0
      %p154 = por %p152, %p153
      %p155 = scmp.ne.s32.totalorder %s141, %s142
      %p156 = scmp.eq.s32.totalorder %s24, 1
      %p157 = por %p155, %p156
      %p159 = scmp.ne.s32.totalorder %s142, %s158
      %p160 = scmp.eq.s32.totalorder %s24, 0
      %p161 = por %p159, %p160
      %p162 = scmp.le.s32.totalorder 1, %s18
      %p163 = scmp.lt.s32.totalorder %s18, 3
      %p164 = pnand %p162, %p163
      %p165 = pneg %p164
      // Predicated region
      $region9: #{tpu_custom_call.1} parent=5 // pred_check
        _
      $region10: #{tpu_custom_call.1} parent=5 // pred_check_branch
        %167 = sbr.rel (%p164) target = $region12
      $region11: #{tpu_custom_call.1} parent=5 // pred_region
        %s168 = ssub.s32 %s18, 1
        // Predicated region
        $region13: #{tpu_custom_call.1} parent=11 // pred_check
          %p169 = pneg %p65
        $region14: #{tpu_custom_call.1} parent=11 // pred_check_branch
          %171 = sbr.rel (%p169) target = $region16
        $region15: #{tpu_custom_call.1} parent=11 // pred_region
          %s173 = ssub.s32 256, 256
          %174 = vsyncadd [#allocation6], %s173
          %s175 = sshll.u32 [#allocation5], 4
          %s176 = int_to_ptr.vmem [resolvable:$true] %s175
          %181 = dma.hbm_to_vmem [thread:$0]  %s1, 256, %s176, [#allocation6], 64, 64, 4
        $region16: #{tpu_custom_call.1} parent=11 // pred_fallthru
          _
        // Predicated region
        $region17: #{tpu_custom_call.1} parent=11 // pred_check
          %p182 = pneg %p86
        $region18: #{tpu_custom_call.1} parent=11 // pred_check_branch
          %184 = sbr.rel (%p182) target = $region20
        $region19: #{tpu_custom_call.1} parent=11 // pred_region
          %s186 = ssub.s32 256, 256
          %187 = vsyncadd [#allocation6], %s186
          %s188 = sshll.u32 [#allocation7], 4
          %s189 = int_to_ptr.vmem [resolvable:$true] %s188
          %194 = dma.hbm_to_vmem [thread:$0]  %s2, 256, %s189, [#allocation6], 64, 64, 4
        $region20: #{tpu_custom_call.1} parent=11 // pred_fallthru
          _
        // Predicated region
        $region21: #{tpu_custom_call.1} parent=11 // pred_check
          %p195 = pneg %p107
        $region22: #{tpu_custom_call.1} parent=11 // pred_check_branch
          %197 = sbr.rel (%p195) target = $region24
        $region23: #{tpu_custom_call.1} parent=11 // pred_region
          _
        $region24: #{tpu_custom_call.1} parent=11 // pred_fallthru
          _
        // Predicated region
        $region25: #{tpu_custom_call.1} parent=11 // pred_check
          %p198 = pneg %p128
        $region26: #{tpu_custom_call.1} parent=11 // pred_check_branch
          %200 = sbr.rel (%p198) target = $region28
        $region27: #{tpu_custom_call.1} parent=11 // pred_region
          _
        $region28: #{tpu_custom_call.1} parent=11 // pred_fallthru
          _
      $region12: #{tpu_custom_call.1} parent=5 // pred_fallthru
        _
      %p201 = scmp.lt.s32.totalorder %s18, 2
      // Predicated region
      $region29: #{tpu_custom_call.1} parent=5 // pred_check
        %p202 = pneg %p201
      $region30: #{tpu_custom_call.1} parent=5 // pred_check_branch
        %204 = sbr.rel (%p202) target = $region32
      $region31: #{tpu_custom_call.1} parent=5 // pred_region
        // Predicated region
        $region33: #{tpu_custom_call.1} parent=31 // pred_check
          %p205 = pneg %p38
        $region34: #{tpu_custom_call.1} parent=31 // pred_check_branch
          %207 = sbr.rel (%p205) target = $region36
        $region35: #{tpu_custom_call.1} parent=31 // pred_region
          %s208 = sand.u32 %s28, 1
          %s209 = scalar_lea.sflag [#allocation3], %s208
          %s210 = sand.u32 %s28, 1
          %s211 = smul.addr %s210, 4
          %s212 = scalar_lea.vmem [#allocation2], %s211
          %s214 = ssub.s32 64, 64
          %215 = vsyncadd %s209, %s214
          %s216 = smul.addr %s18, 64
          %s217 = scalar_lea.hbm %s0, %s216
          %s219 = sshll.u32 %s212, 4
          %s220 = int_to_ptr.vmem [resolvable:$true] %s219
          %222 = dma.hbm_to_vmem [thread:$0]  %s217, 64, %s220, %s209
        $region36: #{tpu_custom_call.1} parent=31 // pred_fallthru
          _
      $region32: #{tpu_custom_call.1} parent=5 // pred_fallthru
        _
      %p223 = scmp.le.s32.totalorder 1, %s18
      %p224 = scmp.lt.s32.totalorder %s18, 3
      %p225 = pnand %p223, %p224
      %p226 = pneg %p225
      // Predicated region
      $region37: #{tpu_custom_call.1} parent=5 // pred_check
        _
      $region38: #{tpu_custom_call.1} parent=5 // pred_check_branch
        %228 = sbr.rel (%p225) target = $region40
      $region39: #{tpu_custom_call.1} parent=5 // pred_region
        %s229 = ssub.s32 %s18, 1
        %s230 = sand.u32 %s31, 1
        %s231 = scalar_lea.sflag [#allocation3], %s230
        %s232 = sand.u32 %s31, 1
        %s233 = smul.addr %s232, 4
        %s234 = scalar_lea.vmem [#allocation2], %s233
        // Predicated region
        $region41: #{tpu_custom_call.1} parent=39 // pred_check
          %p235 = pneg %p44
        $region42: #{tpu_custom_call.1} parent=39 // pred_check_branch
          %237 = sbr.rel (%p235) target = $region44
        $region43: #{tpu_custom_call.1} parent=39 // pred_region
          %238 = dma.done %s231, 64
        $region44: #{tpu_custom_call.1} parent=39 // pred_fallthru
          _
        // Predicated region
        $region45: #{tpu_custom_call.1} parent=39 // pred_check
          %p239 = pneg %p65
        $region46: #{tpu_custom_call.1} parent=39 // pred_check_branch
          %241 = sbr.rel (%p239) target = $region48
        $region47: #{tpu_custom_call.1} parent=39 // pred_region
          %242 = dma.done [#allocation6], 256
        $region48: #{tpu_custom_call.1} parent=39 // pred_fallthru
          _
        // Predicated region
        $region49: #{tpu_custom_call.1} parent=39 // pred_check
          %p243 = pneg %p86
        $region50: #{tpu_custom_call.1} parent=39 // pred_check_branch
          %245 = sbr.rel (%p243) target = $region52
        $region51: #{tpu_custom_call.1} parent=39 // pred_region
          %246 = dma.done [#allocation6], 256
        $region52: #{tpu_custom_call.1} parent=39 // pred_fallthru
          _
        %s247 = sand.u32 %s31, 1
        %s248 = scalar_lea.sflag [#allocation3], %s247
        %s249 = sand.u32 %s31, 1
        %s250 = smul.addr %s249, 4
        %s251 = scalar_lea.vmem [#allocation2], %s250
        %p252 = pneg %p44
        %p253 = pneg %p41
        %p254 = pneg %p65
        %p255 = pneg %p62
        %p256 = pneg %p86
        %p257 = pneg %p83
        %p258 = pneg %p107
        %p259 = pneg %p104
        %p260 = pneg %p128
        %p261 = pneg %p125
        %p262 = pneg %p154
        %p263 = pneg %p151
        %s264 = sand.u32 %s141, 1
        %s265 = scalar_lea.sflag [#allocation4], %s264
        %s266 = sand.u32 %s141, 1
        %s267 = smul.addr %s266, 8
        %s268 = scalar_lea.vmem [#allocation8], %s267
        %v270 = vld [vmem:[%s234] sm:$0xf]
        %v271 = vld [vmem:[#allocation5] sm:$0xf]
        %v272 = vld [vmem:[#allocation5 + $0x4] sm:$0xf]
        %v273 = vld [vmem:[#allocation5 + $0x8] sm:$0xf]
        %v274 = vld [vmem:[#allocation5 + $0xc] sm:$0xf]
        %v275 = vld [vmem:[#allocation7] sm:$0xf]
        %v276 = vld [vmem:[#allocation7 + $0x4] sm:$0xf]
        %v277 = vld [vmem:[#allocation7 + $0x8] sm:$0xf]
        %v278 = vld [vmem:[#allocation7 + $0xc] sm:$0xf]
        %v279 = vld [vmem:[%s3] sm:$0x1]
        %v280 = vld [vmem:[%s4] sm:$0x1]
        %v282 = vlaneseq
        %v283 = vshrl.u32 %v282, 7
        %v284 = vsub.s32 0, %v283
        %v285 = vrot.slane %v279, %v284
        %v291 = vunpack.c.l.b16 %v271
        %v292 = vunpack.c.l.b16 %v272
        %v293 = vunpack.c.l.b16 %v273
        %v294 = vunpack.c.l.b16 %v274
        %v295 = vpack.c.b16 %v292, %v291
        %v296 = vpack.c.b16 %v294, %v293
        %vm299 = vcmask 261120
        %v301 = vsel %vm299, %v270, 0
        %303 = vmatprep.subr.bf16.mxu0 0
        %304 = vmatpush1.bf16.msra.mxu0 %v295
        %305 = vmatprep.subr.bf16.mxu0 0
        %306 = vmatpush1.bf16.msra.mxu0 %v296
        %307 = vmatprep.subr.bf16.mxu0 0
        %308 = vmatpush1.bf16.msra.mxu0 0
        %309 = vmatprep.subr.bf16.mxu0 0
        %310 = vmatpush1.bf16.msra.mxu0 0
        %311 = vmatprep.subr.bf16.mxu0 0
        %312 = vmatpush1.bf16.msra.mxu0 0
        %313 = vmatprep.subr.bf16.mxu0 0
        %314 = vmatpush1.bf16.msra.mxu0 0
        %315 = vmatprep.subr.bf16.mxu0 0
        %316 = vmatpush1.bf16.msra.mxu0 0
        %317 = vmatprep.subr.bf16.mxu0 0
        %318 = vmatpush1.bf16.msra.mxu0 0
        %319 = vmatprep.subr.bf16.mxu0 0
        %320 = vmatpush1.bf16.msra.mxu0 0
        %321 = vmatprep.subr.bf16.mxu0 0
        %322 = vmatpush1.bf16.msra.mxu0 0
        %323 = vmatprep.subr.bf16.mxu0 0
        %324 = vmatpush1.bf16.msra.mxu0 0
        %325 = vmatprep.subr.bf16.mxu0 0
        %326 = vmatpush1.bf16.msra.mxu0 0
        %327 = vmatprep.subr.bf16.mxu0 0
        %328 = vmatpush1.bf16.msra.mxu0 0
        %329 = vmatprep.subr.bf16.mxu0 0
        %330 = vmatpush1.bf16.msra.mxu0 0
        %331 = vmatprep.subr.bf16.mxu0 0
        %332 = vmatpush1.bf16.msra.mxu0 0
        %333 = vmatprep.subr.bf16.mxu0 0
        %334 = vmatpush1.bf16.msra.mxu0 0
        %335 = vmatprep.mubr.bf16.mxu0 0
        %336 = vmatmul.mubr.bf16.gmra.mrb[0].mxu0 %v301
        %v337 = vpop.f32.mrb[0].mxu0
        %v338 = vadd.f32 %v285, %v337
        %v339 = vpop.f32.mrb[0].mxu0
        %v340 = vpop.f32.mrb[0].mxu0
        %v341 = vpop.f32.mrb[0].mxu0
        %342 = vdwg.mxu0
        %v343 = vmul.f32 %v338, 0.35355338
        %v344 = vpack.c.bf16 %v343, %v343
        %v345 = vpack.c.bf16 %v338, %v338
        %v347 = vlaneseq
        %v348 = vshrl.u32 %v347, 7
        %v349 = vsub.s32 0, %v348
        %v350 = vrot.slane %v280, %v349
        %353 = vrot.lane.b32.xlu0 %v345, 96
        %v354 = vpop.permute.xlu0 %353
        %vm355 = vcmask 64512
        %v357 = vsel %vm355, %v344, 0
        %v360 = vsel %vm355, %v354, 0
        %362 = vmatprep.subr.bf16.mxu0 0
        %363 = vmatpush1.bf16.xpose.msra.mxu0 %v360
        %364 = vmatprep.subr.bf16.mxu0 0
        %365 = vmatpush1.bf16.xpose.msra.mxu0 0
        %366 = vmatprep.subr.bf16.mxu0 0
        %367 = vmatpush1.bf16.xpose.msra.mxu0 0
        %368 = vmatprep.subr.bf16.mxu0 0
        %369 = vmatpush1.bf16.xpose.msra.mxu0 0
        %370 = vmatprep.subr.bf16.mxu0 0
        %371 = vmatpush1.bf16.xpose.msra.mxu0 0
        %372 = vmatprep.subr.bf16.mxu0 0
        %373 = vmatpush1.bf16.xpose.msra.mxu0 0
        %374 = vmatprep.subr.bf16.mxu0 0
        %375 = vmatpush1.bf16.xpose.msra.mxu0 0
        %376 = vmatprep.subr.bf16.mxu0 0
        %377 = vmatpush1.bf16.xpose.msra.mxu0 0
        %378 = vmatprep.subr.bf16.mxu0 0
        %379 = vmatpush1.bf16.xpose.msra.mxu0 0
        %380 = vmatprep.subr.bf16.mxu0 0
        %381 = vmatpush1.bf16.xpose.msra.mxu0 0
        %382 = vmatprep.subr.bf16.mxu0 0
        %383 = vmatpush1.bf16.xpose.msra.mxu0 0
        %384 = vmatprep.subr.bf16.mxu0 0
        %385 = vmatpush1.bf16.xpose.msra.mxu0 0
        %386 = vmatprep.subr.bf16.mxu0 0
        %387 = vmatpush1.bf16.xpose.msra.mxu0 0
        %388 = vmatprep.subr.bf16.mxu0 0
        %389 = vmatpush1.bf16.xpose.msra.mxu0 0
        %390 = vmatprep.subr.bf16.mxu0 0
        %391 = vmatpush1.bf16.xpose.msra.mxu0 0
        %392 = vmatprep.subr.bf16.mxu0 0
        %393 = vmatpush1.bf16.xpose.msra.mxu0 0
        %394 = vmatprep.mubr.bf16.mxu0 0
        %395 = vmatmul.mubr.bf16.gmra.mrb[0].mxu0 %v357
        %v396 = vpop.f32.mrb[0].mxu0
        %v397 = vadd.f32 0.0, %v396
        %v398 = vpop.f32.mrb[0].mxu0
        %v399 = vpop.f32.mrb[0].mxu0
        %v400 = vpop.f32.mrb[0].mxu0
        %401 = vdwg.mxu0
        %v402 = vsel %vm355, %v397, -inf
        %403 = vmax.xlane.f32.xlu0 %v402
        %v404 = vpop.xlane.xlu0 %403
        %v405 = vsub.f32 %v397, %v404
        %v406 = vmul.f32 %v405, 1.442695
        %v407 = vpow.pop %v406
        %v408 = vsel %vm355, %v407, 0.0
        %409 = vadd.xlane.f32.xlu0 %v408
        %v410 = vpop.xlane.xlu0 %409
        %v411 = vrcp.pop %v410
        %v412 = vmul.f32 %v407, %v411
        %v413 = vpack.c.bf16 %v412, %v412
        %414 = vrot.lane.b32.xlu0 %v345, 64
        %v415 = vpop.permute.xlu0 %414
        %v417 = vsel %vm355, %v413, 0
        %vm419 = vcmask 1043456
        %v421 = vsel %vm419, %v415, 0
        %423 = vmatprep.subr.bf16.mxu0 0
        %424 = vmatpush1.bf16.msra.mxu0 %v421
        %425 = vmatprep.subr.bf16.mxu0 0
        %426 = vmatpush1.bf16.msra.mxu0 0
        %427 = vmatprep.subr.bf16.mxu0 0
        %428 = vmatpush1.bf16.msra.mxu0 0
        %429 = vmatprep.subr.bf16.mxu0 0
        %430 = vmatpush1.bf16.msra.mxu0 0
        %431 = vmatprep.subr.bf16.mxu0 0
        %432 = vmatpush1.bf16.msra.mxu0 0
        %433 = vmatprep.subr.bf16.mxu0 0
        %434 = vmatpush1.bf16.msra.mxu0 0
        %435 = vmatprep.subr.bf16.mxu0 0
        %436 = vmatpush1.bf16.msra.mxu0 0
        %437 = vmatprep.subr.bf16.mxu0 0
        %438 = vmatpush1.bf16.msra.mxu0 0
        %439 = vmatprep.subr.bf16.mxu0 0
        %440 = vmatpush1.bf16.msra.mxu0 0
        %441 = vmatprep.subr.bf16.mxu0 0
        %442 = vmatpush1.bf16.msra.mxu0 0
        %443 = vmatprep.subr.bf16.mxu0 0
        %444 = vmatpush1.bf16.msra.mxu0 0
        %445 = vmatprep.subr.bf16.mxu0 0
        %446 = vmatpush1.bf16.msra.mxu0 0
        %447 = vmatprep.subr.bf16.mxu0 0
        %448 = vmatpush1.bf16.msra.mxu0 0
        %449 = vmatprep.subr.bf16.mxu0 0
        %450 = vmatpush1.bf16.msra.mxu0 0
        %451 = vmatprep.subr.bf16.mxu0 0
        %452 = vmatpush1.bf16.msra.mxu0 0
        %453 = vmatprep.subr.bf16.mxu0 0
        %454 = vmatpush1.bf16.msra.mxu0 0
        %455 = vmatprep.mubr.bf16.mxu0 0
        %456 = vmatmul.mubr.bf16.gmra.mrb[0].mxu0 %v417
        %v457 = vpop.f32.mrb[0].mxu0
        %v458 = vadd.f32 0.0, %v457
        %v459 = vpop.f32.mrb[0].mxu0
        %v460 = vpop.f32.mrb[0].mxu0
        %v461 = vpop.f32.mrb[0].mxu0
        %462 = vdwg.mxu0
        %v463 = vpack.c.bf16 %v458, %v458
        %v465 = vsel %vm355, %v463, 0
        %v468 = vsel %vm419, %v275, 0
        %470 = vmatprep.subr.bf16.mxu0 0
        %471 = vmatpush1.bf16.msra.mxu0 %v468
        %472 = vmatprep.subr.bf16.mxu0 0
        %473 = vmatpush1.bf16.msra.mxu0 0
        %474 = vmatprep.subr.bf16.mxu0 0
        %475 = vmatpush1.bf16.msra.mxu0 0
        %476 = vmatprep.subr.bf16.mxu0 0
        %477 = vmatpush1.bf16.msra.mxu0 0
        %478 = vmatprep.subr.bf16.mxu0 0
        %479 = vmatpush1.bf16.msra.mxu0 0
        %480 = vmatprep.subr.bf16.mxu0 0
        %481 = vmatpush1.bf16.msra.mxu0 0
        %482 = vmatprep.subr.bf16.mxu0 0
        %483 = vmatpush1.bf16.msra.mxu0 0
        %484 = vmatprep.subr.bf16.mxu0 0
        %485 = vmatpush1.bf16.msra.mxu0 0
        %486 = vmatprep.subr.bf16.mxu0 0
        %487 = vmatpush1.bf16.msra.mxu0 0
        %488 = vmatprep.subr.bf16.mxu0 0
        %489 = vmatpush1.bf16.msra.mxu0 0
        %490 = vmatprep.subr.bf16.mxu0 0
        %491 = vmatpush1.bf16.msra.mxu0 0
        %492 = vmatprep.subr.bf16.mxu0 0
        %493 = vmatpush1.bf16.msra.mxu0 0
        %494 = vmatprep.subr.bf16.mxu0 0
        %495 = vmatpush1.bf16.msra.mxu0 0
        %496 = vmatprep.subr.bf16.mxu0 0
        %497 = vmatpush1.bf16.msra.mxu0 0
        %498 = vmatprep.subr.bf16.mxu0 0
        %499 = vmatpush1.bf16.msra.mxu0 0
        %500 = vmatprep.subr.bf16.mxu0 0
        %501 = vmatpush1.bf16.msra.mxu0 0
        %502 = vmatprep.mubr.bf16.mxu0 0
        %503 = vmatmul.mubr.bf16.gmra.mrb[0].mxu0 %v465
        %v504 = vpop.f32.mrb[0].mxu0
        %v505 = vadd.f32 0.0, %v504
        %v506 = vpop.f32.mrb[0].mxu0
        %v507 = vpop.f32.mrb[0].mxu0
        %v508 = vpop.f32.mrb[0].mxu0
        %509 = vdwg.mxu0
        %v510 = vadd.f32 %v350, %v505
        %512 = vrot.lane.b32.xlu0 %v344, 120
        %v513 = vpop.permute.xlu0 %512
        %514 = vrot.lane.b32.xlu0 %v345, 88
        %v515 = vpop.permute.xlu0 %514
        %v517 = vsel %vm355, %v513, 0
        %v520 = vsel %vm355, %v515, 0
        %522 = vmatprep.subr.bf16.mxu0 0
        %523 = vmatpush1.bf16.xpose.msra.mxu0 %v520
        %524 = vmatprep.subr.bf16.mxu0 0
        %525 = vmatpush1.bf16.xpose.msra.mxu0 0
        %526 = vmatprep.subr.bf16.mxu0 0
        %527 = vmatpush1.bf16.xpose.msra.mxu0 0
        %528 = vmatprep.subr.bf16.mxu0 0
        %529 = vmatpush1.bf16.xpose.msra.mxu0 0
        %530 = vmatprep.subr.bf16.mxu0 0
        %531 = vmatpush1.bf16.xpose.msra.mxu0 0
        %532 = vmatprep.subr.bf16.mxu0 0
        %533 = vmatpush1.bf16.xpose.msra.mxu0 0
        %534 = vmatprep.subr.bf16.mxu0 0
        %535 = vmatpush1.bf16.xpose.msra.mxu0 0
        %536 = vmatprep.subr.bf16.mxu0 0
        %537 = vmatpush1.bf16.xpose.msra.mxu0 0
        %538 = vmatprep.subr.bf16.mxu0 0
        %539 = vmatpush1.bf16.xpose.msra.mxu0 0
        %540 = vmatprep.subr.bf16.mxu0 0
        %541 = vmatpush1.bf16.xpose.msra.mxu0 0
        %542 = vmatprep.subr.bf16.mxu0 0
        %543 = vmatpush1.bf16.xpose.msra.mxu0 0
        %544 = vmatprep.subr.bf16.mxu0 0
        %545 = vmatpush1.bf16.xpose.msra.mxu0 0
        %546 = vmatprep.subr.bf16.mxu0 0
        %547 = vmatpush1.bf16.xpose.msra.mxu0 0
        %548 = vmatprep.subr.bf16.mxu0 0
        %549 = vmatpush1.bf16.xpose.msra.mxu0 0
        %550 = vmatprep.subr.bf16.mxu0 0
        %551 = vmatpush1.bf16.xpose.msra.mxu0 0
        %552 = vmatprep.subr.bf16.mxu0 0
        %553 = vmatpush1.bf16.xpose.msra.mxu0 0
        %554 = vmatprep.mubr.bf16.mxu0 0
        %555 = vmatmul.mubr.bf16.gmra.mrb[0].mxu0 %v517
        %v556 = vpop.f32.mrb[0].mxu0
        %v557 = vadd.f32 0.0, %v556
        %v558 = vpop.f32.mrb[0].mxu0
        %v559 = vpop.f32.mrb[0].mxu0
        %v560 = vpop.f32.mrb[0].mxu0
        %561 = vdwg.mxu0
        %v562 = vsel %vm355, %v557, -inf
        %563 = vmax.xlane.f32.xlu0 %v562
        %v564 = vpop.xlane.xlu0 %563
        %v565 = vsub.f32 %v557, %v564
        %v566 = vmul.f32 %v565, 1.442695
        %v567 = vpow.pop %v566
        %v568 = vsel %vm355, %v567, 0.0
        %569 = vadd.xlane.f32.xlu0 %v568
        %v570 = vpop.xlane.xlu0 %569
        %v571 = vrcp.pop %v570
        %v572 = vmul.f32 %v567, %v571
        %v573 = vpack.c.bf16 %v572, %v572
        %574 = vrot.lane.b32.xlu0 %v345, 56
        %v575 = vpop.permute.xlu0 %574
        %v577 = vsel %vm355, %v573, 0
        %v580 = vsel %vm419, %v575, 0
        %582 = vmatprep.subr.bf16.mxu0 0
        %583 = vmatpush1.bf16.msra.mxu0 %v580
        %584 = vmatprep.subr.bf16.mxu0 0
        %585 = vmatpush1.bf16.msra.mxu0 0
        %586 = vmatprep.subr.bf16.mxu0 0
        %587 = vmatpush1.bf16.msra.mxu0 0
        %588 = vmatprep.subr.bf16.mxu0 0
        %589 = vmatpush1.bf16.msra.mxu0 0
        %590 = vmatprep.subr.bf16.mxu0 0
        %591 = vmatpush1.bf16.msra.mxu0 0
        %592 = vmatprep.subr.bf16.mxu0 0
        %593 = vmatpush1.bf16.msra.mxu0 0
        %594 = vmatprep.subr.bf16.mxu0 0
        %595 = vmatpush1.bf16.msra.mxu0 0
        %596 = vmatprep.subr.bf16.mxu0 0
        %597 = vmatpush1.bf16.msra.mxu0 0
        %598 = vmatprep.subr.bf16.mxu0 0
        %599 = vmatpush1.bf16.msra.mxu0 0
        %600 = vmatprep.subr.bf16.mxu0 0
        %601 = vmatpush1.bf16.msra.mxu0 0
        %602 = vmatprep.subr.bf16.mxu0 0
        %603 = vmatpush1.bf16.msra.mxu0 0
        %604 = vmatprep.subr.bf16.mxu0 0
        %605 = vmatpush1.bf16.msra.mxu0 0
        %606 = vmatprep.subr.bf16.mxu0 0
        %607 = vmatpush1.bf16.msra.mxu0 0
        %608 = vmatprep.subr.bf16.mxu0 0
        %609 = vmatpush1.bf16.msra.mxu0 0
        %610 = vmatprep.subr.bf16.mxu0 0
        %611 = vmatpush1.bf16.msra.mxu0 0
        %612 = vmatprep.subr.bf16.mxu0 0
        %613 = vmatpush1.bf16.msra.mxu0 0
        %614 = vmatprep.mubr.bf16.mxu0 0
        %615 = vmatmul.mubr.bf16.gmra.mrb[0].mxu0 %v577
        %v616 = vpop.f32.mrb[0].mxu0
        %v617 = vadd.f32 0.0, %v616
        %v618 = vpop.f32.mrb[0].mxu0
        %v619 = vpop.f32.mrb[0].mxu0
        %v620 = vpop.f32.mrb[0].mxu0
        %621 = vdwg.mxu0
        %v622 = vpack.c.bf16 %v617, %v617
        %v624 = vsel %vm355, %v622, 0
        %v627 = vsel %vm419, %v276, 0
        %629 = vmatprep.subr.bf16.mxu0 0
        %630 = vmatpush1.bf16.msra.mxu0 %v627
        %631 = vmatprep.subr.bf16.mxu0 0
        %632 = vmatpush1.bf16.msra.mxu0 0
        %633 = vmatprep.subr.bf16.mxu0 0
        %634 = vmatpush1.bf16.msra.mxu0 0
        %635 = vmatprep.subr.bf16.mxu0 0
        %636 = vmatpush1.bf16.msra.mxu0 0
        %637 = vmatprep.subr.bf16.mxu0 0
        %638 = vmatpush1.bf16.msra.mxu0 0
        %639 = vmatprep.subr.bf16.mxu0 0
        %640 = vmatpush1.bf16.msra.mxu0 0
        %641 = vmatprep.subr.bf16.mxu0 0
        %642 = vmatpush1.bf16.msra.mxu0 0
        %643 = vmatprep.subr.bf16.mxu0 0
        %644 = vmatpush1.bf16.msra.mxu0 0
        %645 = vmatprep.subr.bf16.mxu0 0
        %646 = vmatpush1.bf16.msra.mxu0 0
        %647 = vmatprep.subr.bf16.mxu0 0
        %648 = vmatpush1.bf16.msra.mxu0 0
        %649 = vmatprep.subr.bf16.mxu0 0
        %650 = vmatpush1.bf16.msra.mxu0 0
        %651 = vmatprep.subr.bf16.mxu0 0
        %652 = vmatpush1.bf16.msra.mxu0 0
        %653 = vmatprep.subr.bf16.mxu0 0
        %654 = vmatpush1.bf16.msra.mxu0 0
        %655 = vmatprep.subr.bf16.mxu0 0
        %656 = vmatpush1.bf16.msra.mxu0 0
        %657 = vmatprep.subr.bf16.mxu0 0
        %658 = vmatpush1.bf16.msra.mxu0 0
        %659 = vmatprep.subr.bf16.mxu0 0
        %660 = vmatpush1.bf16.msra.mxu0 0
        %661 = vmatprep.mubr.bf16.mxu0 0
        %662 = vmatmul.mubr.bf16.gmra.mrb[0].mxu0 %v624
        %v663 = vpop.f32.mrb[0].mxu0
        %v664 = vadd.f32 0.0, %v663
        %v665 = vpop.f32.mrb[0].mxu0
        %v666 = vpop.f32.mrb[0].mxu0
        %v667 = vpop.f32.mrb[0].mxu0
        %668 = vdwg.mxu0
        %v669 = vadd.f32 %v510, %v664
        %670 = vrot.lane.b32.xlu0 %v344, 112
        %v671 = vpop.permute.xlu0 %670
        %672 = vrot.lane.b32.xlu0 %v345, 80
        %v673 = vpop.permute.xlu0 %672
        %v675 = vsel %vm355, %v671, 0
        %v678 = vsel %vm355, %v673, 0
        %680 = vmatprep.subr.bf16.mxu0 0
        %681 = vmatpush1.bf16.xpose.msra.mxu0 %v678
        %682 = vmatprep.subr.bf16.mxu0 0
        %683 = vmatpush1.bf16.xpose.msra.mxu0 0
        %684 = vmatprep.subr.bf16.mxu0 0
        %685 = vmatpush1.bf16.xpose.msra.mxu0 0
        %686 = vmatprep.subr.bf16.mxu0 0
        %687 = vmatpush1.bf16.xpose.msra.mxu0 0
        %688 = vmatprep.subr.bf16.mxu0 0
        %689 = vmatpush1.bf16.xpose.msra.mxu0 0
        %690 = vmatprep.subr.bf16.mxu0 0
        %691 = vmatpush1.bf16.xpose.msra.mxu0 0
        %692 = vmatprep.subr.bf16.mxu0 0
        %693 = vmatpush1.bf16.xpose.msra.mxu0 0
        %694 = vmatprep.subr.bf16.mxu0 0
        %695 = vmatpush1.bf16.xpose.msra.mxu0 0
        %696 = vmatprep.subr.bf16.mxu0 0
        %697 = vmatpush1.bf16.xpose.msra.mxu0 0
        %698 = vmatprep.subr.bf16.mxu0 0
        %699 = vmatpush1.bf16.xpose.msra.mxu0 0
        %700 = vmatprep.subr.bf16.mxu0 0
        %701 = vmatpush1.bf16.xpose.msra.mxu0 0
        %702 = vmatprep.subr.bf16.mxu0 0
        %703 = vmatpush1.bf16.xpose.msra.mxu0 0
        %704 = vmatprep.subr.bf16.mxu0 0
        %705 = vmatpush1.bf16.xpose.msra.mxu0 0
        %706 = vmatprep.subr.bf16.mxu0 0
        %707 = vmatpush1.bf16.xpose.msra.mxu0 0
        %708 = vmatprep.subr.bf16.mxu0 0
        %709 = vmatpush1.bf16.xpose.msra.mxu0 0
        %710 = vmatprep.subr.bf16.mxu0 0
        %711 = vmatpush1.bf16.xpose.msra.mxu0 0
        %712 = vmatprep.mubr.bf16.mxu0 0
        %713 = vmatmul.mubr.bf16.gmra.mrb[0].mxu0 %v675
        %v714 = vpop.f32.mrb[0].mxu0
        %v715 = vadd.f32 0.0, %v714
        %v716 = vpop.f32.mrb[0].mxu0
        %v717 = vpop.f32.mrb[0].mxu0
        %v718 = vpop.f32.mrb[0].mxu0
        %719 = vdwg.mxu0
        %v720 = vsel %vm355, %v715, -inf
        %721 = vmax.xlane.f32.xlu0 %v720
        %v722 = vpop.xlane.xlu0 %721
        %v723 = vsub.f32 %v715, %v722
        %v724 = vmul.f32 %v723, 1.442695
        %v725 = vpow.pop %v724
        %v726 = vsel %vm355, %v725, 0.0
        %727 = vadd.xlane.f32.xlu0 %v726
        %v728 = vpop.xlane.xlu0 %727
        %v729 = vrcp.pop %v728
        %v730 = vmul.f32 %v725, %v729
        %v731 = vpack.c.bf16 %v730, %v730
        %732 = vrot.lane.b32.xlu0 %v345, 48
        %v733 = vpop.permute.xlu0 %732
        %v735 = vsel %vm355, %v731, 0
        %v738 = vsel %vm419, %v733, 0
        %740 = vmatprep.subr.bf16.mxu0 0
        %741 = vmatpush1.bf16.msra.mxu0 %v738
        %742 = vmatprep.subr.bf16.mxu0 0
        %743 = vmatpush1.bf16.msra.mxu0 0
        %744 = vmatprep.subr.bf16.mxu0 0
        %745 = vmatpush1.bf16.msra.mxu0 0
        %746 = vmatprep.subr.bf16.mxu0 0
        %747 = vmatpush1.bf16.msra.mxu0 0
        %748 = vmatprep.subr.bf16.mxu0 0
        %749 = vmatpush1.bf16.msra.mxu0 0
        %750 = vmatprep.subr.bf16.mxu0 0
        %751 = vmatpush1.bf16.msra.mxu0 0
        %752 = vmatprep.subr.bf16.mxu0 0
        %753 = vmatpush1.bf16.msra.mxu0 0
        %754 = vmatprep.subr.bf16.mxu0 0
        %755 = vmatpush1.bf16.msra.mxu0 0
        %756 = vmatprep.subr.bf16.mxu0 0
        %757 = vmatpush1.bf16.msra.mxu0 0
        %758 = vmatprep.subr.bf16.mxu0 0
        %759 = vmatpush1.bf16.msra.mxu0 0
        %760 = vmatprep.subr.bf16.mxu0 0
        %761 = vmatpush1.bf16.msra.mxu0 0
        %762 = vmatprep.subr.bf16.mxu0 0
        %763 = vmatpush1.bf16.msra.mxu0 0
        %764 = vmatprep.subr.bf16.mxu0 0
        %765 = vmatpush1.bf16.msra.mxu0 0
        %766 = vmatprep.subr.bf16.mxu0 0
        %767 = vmatpush1.bf16.msra.mxu0 0
        %768 = vmatprep.subr.bf16.mxu0 0
        %769 = vmatpush1.bf16.msra.mxu0 0
        %770 = vmatprep.subr.bf16.mxu0 0
        %771 = vmatpush1.bf16.msra.mxu0 0
        %772 = vmatprep.mubr.bf16.mxu0 0
        %773 = vmatmul.mubr.bf16.gmra.mrb[0].mxu0 %v735
        %v774 = vpop.f32.mrb[0].mxu0
        %v775 = vadd.f32 0.0, %v774
        %v776 = vpop.f32.mrb[0].mxu0
        %v777 = vpop.f32.mrb[0].mxu0
        %v778 = vpop.f32.mrb[0].mxu0
        %779 = vdwg.mxu0
        %v780 = vpack.c.bf16 %v775, %v775
        %v782 = vsel %vm355, %v780, 0
        %v785 = vsel %vm419, %v277, 0
        %787 = vmatprep.subr.bf16.mxu0 0
        %788 = vmatpush1.bf16.msra.mxu0 %v785
        %789 = vmatprep.subr.bf16.mxu0 0
        %790 = vmatpush1.bf16.msra.mxu0 0
        %791 = vmatprep.subr.bf16.mxu0 0
        %792 = vmatpush1.bf16.msra.mxu0 0
        %793 = vmatprep.subr.bf16.mxu0 0
        %794 = vmatpush1.bf16.msra.mxu0 0
        %795 = vmatprep.subr.bf16.mxu0 0
        %796 = vmatpush1.bf16.msra.mxu0 0
        %797 = vmatprep.subr.bf16.mxu0 0
        %798 = vmatpush1.bf16.msra.mxu0 0
        %799 = vmatprep.subr.bf16.mxu0 0
        %800 = vmatpush1.bf16.msra.mxu0 0
        %801 = vmatprep.subr.bf16.mxu0 0
        %802 = vmatpush1.bf16.msra.mxu0 0
        %803 = vmatprep.subr.bf16.mxu0 0
        %804 = vmatpush1.bf16.msra.mxu0 0
        %805 = vmatprep.subr.bf16.mxu0 0
        %806 = vmatpush1.bf16.msra.mxu0 0
        %807 = vmatprep.subr.bf16.mxu0 0
        %808 = vmatpush1.bf16.msra.mxu0 0
        %809 = vmatprep.subr.bf16.mxu0 0
        %810 = vmatpush1.bf16.msra.mxu0 0
        %811 = vmatprep.subr.bf16.mxu0 0
        %812 = vmatpush1.bf16.msra.mxu0 0
        %813 = vmatprep.subr.bf16.mxu0 0
        %814 = vmatpush1.bf16.msra.mxu0 0
        %815 = vmatprep.subr.bf16.mxu0 0
        %816 = vmatpush1.bf16.msra.mxu0 0
        %817 = vmatprep.subr.bf16.mxu0 0
        %818 = vmatpush1.bf16.msra.mxu0 0
        %819 = vmatprep.mubr.bf16.mxu0 0
        %820 = vmatmul.mubr.bf16.gmra.mrb[0].mxu0 %v782
        %v821 = vpop.f32.mrb[0].mxu0
        %v822 = vadd.f32 0.0, %v821
        %v823 = vpop.f32.mrb[0].mxu0
        %v824 = vpop.f32.mrb[0].mxu0
        %v825 = vpop.f32.mrb[0].mxu0
        %826 = vdwg.mxu0
        %v827 = vadd.f32 %v669, %v822
        %828 = vrot.lane.b32.xlu0 %v344, 104
        %v829 = vpop.permute.xlu0 %828
        %830 = vrot.lane.b32.xlu0 %v345, 72
        %v831 = vpop.permute.xlu0 %830
        %v833 = vsel %vm355, %v829, 0
        %v836 = vsel %vm355, %v831, 0
        %838 = vmatprep.subr.bf16.mxu0 0
        %839 = vmatpush1.bf16.xpose.msra.mxu0 %v836
        %840 = vmatprep.subr.bf16.mxu0 0
        %841 = vmatpush1.bf16.xpose.msra.mxu0 0
        %842 = vmatprep.subr.bf16.mxu0 0
        %843 = vmatpush1.bf16.xpose.msra.mxu0 0
        %844 = vmatprep.subr.bf16.mxu0 0
        %845 = vmatpush1.bf16.xpose.msra.mxu0 0
        %846 = vmatprep.subr.bf16.mxu0 0
        %847 = vmatpush1.bf16.xpose.msra.mxu0 0
        %848 = vmatprep.subr.bf16.mxu0 0
        %849 = vmatpush1.bf16.xpose.msra.mxu0 0
        %850 = vmatprep.subr.bf16.mxu0 0
        %851 = vmatpush1.bf16.xpose.msra.mxu0 0
        %852 = vmatprep.subr.bf16.mxu0 0
        %853 = vmatpush1.bf16.xpose.msra.mxu0 0
        %854 = vmatprep.subr.bf16.mxu0 0
        %855 = vmatpush1.bf16.xpose.msra.mxu0 0
        %856 = vmatprep.subr.bf16.mxu0 0
        %857 = vmatpush1.bf16.xpose.msra.mxu0 0
        %858 = vmatprep.subr.bf16.mxu0 0
        %859 = vmatpush1.bf16.xpose.msra.mxu0 0
        %860 = vmatprep.subr.bf16.mxu0 0
        %861 = vmatpush1.bf16.xpose.msra.mxu0 0
        %862 = vmatprep.subr.bf16.mxu0 0
        %863 = vmatpush1.bf16.xpose.msra.mxu0 0
        %864 = vmatprep.subr.bf16.mxu0 0
        %865 = vmatpush1.bf16.xpose.msra.mxu0 0
        %866 = vmatprep.subr.bf16.mxu0 0
        %867 = vmatpush1.bf16.xpose.msra.mxu0 0
        %868 = vmatprep.subr.bf16.mxu0 0
        %869 = vmatpush1.bf16.xpose.msra.mxu0 0
        %870 = vmatprep.mubr.bf16.mxu0 0
        %871 = vmatmul.mubr.bf16.gmra.mrb[0].mxu0 %v833
        %v872 = vpop.f32.mrb[0].mxu0
        %v873 = vadd.f32 0.0, %v872
        %v874 = vpop.f32.mrb[0].mxu0
        %v875 = vpop.f32.mrb[0].mxu0
        %v876 = vpop.f32.mrb[0].mxu0
        %877 = vdwg.mxu0
        %v878 = vsel %vm355, %v873, -inf
        %879 = vmax.xlane.f32.xlu0 %v878
        %v880 = vpop.xlane.xlu0 %879
        %v881 = vsub.f32 %v873, %v880
        %v882 = vmul.f32 %v881, 1.442695
        %v883 = vpow.pop %v882
        %v884 = vsel %vm355, %v883, 0.0
        %885 = vadd.xlane.f32.xlu0 %v884
        %v886 = vpop.xlane.xlu0 %885
        %v887 = vrcp.pop %v886
        %v888 = vmul.f32 %v883, %v887
        %v889 = vpack.c.bf16 %v888, %v888
        %890 = vrot.lane.b32.xlu0 %v345, 40
        %v891 = vpop.permute.xlu0 %890
        %v893 = vsel %vm355, %v889, 0
        %v896 = vsel %vm419, %v891, 0
        %898 = vmatprep.subr.bf16.mxu0 0
        %899 = vmatpush1.bf16.msra.mxu0 %v896
        %900 = vmatprep.subr.bf16.mxu0 0
        %901 = vmatpush1.bf16.msra.mxu0 0
        %902 = vmatprep.subr.bf16.mxu0 0
        %903 = vmatpush1.bf16.msra.mxu0 0
        %904 = vmatprep.subr.bf16.mxu0 0
        %905 = vmatpush1.bf16.msra.mxu0 0
        %906 = vmatprep.subr.bf16.mxu0 0
        %907 = vmatpush1.bf16.msra.mxu0 0
        %908 = vmatprep.subr.bf16.mxu0 0
        %909 = vmatpush1.bf16.msra.mxu0 0
        %910 = vmatprep.subr.bf16.mxu0 0
        %911 = vmatpush1.bf16.msra.mxu0 0
        %912 = vmatprep.subr.bf16.mxu0 0
        %913 = vmatpush1.bf16.msra.mxu0 0
        %914 = vmatprep.subr.bf16.mxu0 0
        %915 = vmatpush1.bf16.msra.mxu0 0
        %916 = vmatprep.subr.bf16.mxu0 0
        %917 = vmatpush1.bf16.msra.mxu0 0
        %918 = vmatprep.subr.bf16.mxu0 0
        %919 = vmatpush1.bf16.msra.mxu0 0
        %920 = vmatprep.subr.bf16.mxu0 0
        %921 = vmatpush1.bf16.msra.mxu0 0
        %922 = vmatprep.subr.bf16.mxu0 0
        %923 = vmatpush1.bf16.msra.mxu0 0
        %924 = vmatprep.subr.bf16.mxu0 0
        %925 = vmatpush1.bf16.msra.mxu0 0
        %926 = vmatprep.subr.bf16.mxu0 0
        %927 = vmatpush1.bf16.msra.mxu0 0
        %928 = vmatprep.subr.bf16.mxu0 0
        %929 = vmatpush1.bf16.msra.mxu0 0
        %930 = vmatprep.mubr.bf16.mxu0 0
        %931 = vmatmul.mubr.bf16.gmra.mrb[0].mxu0 %v893
        %v932 = vpop.f32.mrb[0].mxu0
        %v933 = vadd.f32 0.0, %v932
        %v934 = vpop.f32.mrb[0].mxu0
        %v935 = vpop.f32.mrb[0].mxu0
        %v936 = vpop.f32.mrb[0].mxu0
        %937 = vdwg.mxu0
        %v938 = vpack.c.bf16 %v933, %v933
        %v940 = vsel %vm355, %v938, 0
        %v943 = vsel %vm419, %v278, 0
        %945 = vmatprep.subr.bf16.mxu0 0
        %946 = vmatpush1.bf16.msra.mxu0 %v943
        %947 = vmatprep.subr.bf16.mxu0 0
        %948 = vmatpush1.bf16.msra.mxu0 0
        %949 = vmatprep.subr.bf16.mxu0 0
        %950 = vmatpush1.bf16.msra.mxu0 0
        %951 = vmatprep.subr.bf16.mxu0 0
        %952 = vmatpush1.bf16.msra.mxu0 0
        %953 = vmatprep.subr.bf16.mxu0 0
        %954 = vmatpush1.bf16.msra.mxu0 0
        %955 = vmatprep.subr.bf16.mxu0 0
        %956 = vmatpush1.bf16.msra.mxu0 0
        %957 = vmatprep.subr.bf16.mxu0 0
        %958 = vmatpush1.bf16.msra.mxu0 0
        %959 = vmatprep.subr.bf16.mxu0 0
        %960 = vmatpush1.bf16.msra.mxu0 0
        %961 = vmatprep.subr.bf16.mxu0 0
        %962 = vmatpush1.bf16.msra.mxu0 0
        %963 = vmatprep.subr.bf16.mxu0 0
        %964 = vmatpush1.bf16.msra.mxu0 0
        %965 = vmatprep.subr.bf16.mxu0 0
        %966 = vmatpush1.bf16.msra.mxu0 0
        %967 = vmatprep.subr.bf16.mxu0 0
        %968 = vmatpush1.bf16.msra.mxu0 0
        %969 = vmatprep.subr.bf16.mxu0 0
        %970 = vmatpush1.bf16.msra.mxu0 0
        %971 = vmatprep.subr.bf16.mxu0 0
        %972 = vmatpush1.bf16.msra.mxu0 0
        %973 = vmatprep.subr.bf16.mxu0 0
        %974 = vmatpush1.bf16.msra.mxu0 0
        %975 = vmatprep.subr.bf16.mxu0 0
        %976 = vmatpush1.bf16.msra.mxu0 0
        %977 = vmatprep.mubr.bf16.mxu0 0
        %978 = vmatmul.mubr.bf16.gmra.mrb[0].mxu0 %v940
        %v979 = vpop.f32.mrb[0].mxu0
        %v980 = vadd.f32 0.0, %v979
        %v981 = vpop.f32.mrb[0].mxu0
        %v982 = vpop.f32.mrb[0].mxu0
        %v983 = vpop.f32.mrb[0].mxu0
        %984 = vdwg.mxu0
        %v985 = vadd.f32 %v827, %v980
        %986 = vst.msk [vmem:[%s268] sm:$0xff] %vm299, %v985
        %s987 = sand.u32 %s141, 1
        %s988 = scalar_lea.sflag [#allocation4], %s987
        %s989 = sand.u32 %s141, 1
        %s990 = smul.addr %s989, 8
        %s991 = scalar_lea.vmem [#allocation8], %s990
        // Predicated region
        $region53: #{tpu_custom_call.1} parent=39 // pred_check
          %p992 = pneg %p151
        $region54: #{tpu_custom_call.1} parent=39 // pred_check_branch
          %994 = sbr.rel (%p992) target = $region56
        $region55: #{tpu_custom_call.1} parent=39 // pred_region
          %s996 = ssub.s32 128, 128
          %997 = vsyncadd %s988, %s996
          %s998 = smul.addr %s23, 128
          %s999 = scalar_lea.hbm %s5, %s998
          %s1001 = sshll.u32 %s991, 4
          %s1002 = int_to_ptr.vmem [resolvable:$true] %s1001
          %1004 = dma.vmem_to_hbm [thread:$0]  %s1002, 128, %s999, %s988
        $region56: #{tpu_custom_call.1} parent=39 // pred_fallthru
          _
      $region40: #{tpu_custom_call.1} parent=5 // pred_fallthru
        _
      %p1005 = scmp.le.s32.totalorder 2, %s18
      // Predicated region
      $region57: #{tpu_custom_call.1} parent=5 // pred_check
        %p1006 = pneg %p1005
      $region58: #{tpu_custom_call.1} parent=5 // pred_check_branch
        %1008 = sbr.rel (%p1006) target = $region60
      $region59: #{tpu_custom_call.1} parent=5 // pred_region
        %s1009 = ssub.s32 %s18, 2
        // Predicated region
        $region61: #{tpu_custom_call.1} parent=59 // pred_check
          %p1010 = pneg %p157
        $region62: #{tpu_custom_call.1} parent=59 // pred_check_branch
          %1012 = sbr.rel (%p1010) target = $region64
        $region63: #{tpu_custom_call.1} parent=59 // pred_region
          %s1013 = sand.u32 %s142, 1
          %s1014 = scalar_lea.sflag [#allocation4], %s1013
          %s1015 = sand.u32 %s142, 1
          %s1016 = smul.addr %s1015, 8
          %s1017 = scalar_lea.vmem [#allocation8], %s1016
          %1018 = dma.done %s1014, 128
        $region64: #{tpu_custom_call.1} parent=59 // pred_fallthru
          _
      $region60: #{tpu_custom_call.1} parent=5 // pred_fallthru
        _
    $region6: #{tpu_custom_call.1} parent=1 // loop_footer
      %s22 = sadd.s32 1, %s18
    $region7: #{tpu_custom_call.1} parent=1 // loop_footer_branch
      %17 = sbr.rel target = $region3
    $region8: #{tpu_custom_call.1} parent=1 // loop_exit
      _
    %1019 = vsyncpa [#allocation3], 1
    %s1020 = scalar_lea.sflag [#allocation3], 1
    %1021 = vsyncpa %s1020, 1
    %1022 = vsyncpa [#allocation6], 1
    %1023 = vsyncpa [#allocation4], 1
    %s1024 = scalar_lea.sflag [#allocation4], 1
    %1025 = vsyncpa %s1024, 1

</llo_original>
